<compile_context>
chip_gen: v5e
topology: v5e:2x2
jax: 0.10.0
libtpu: 0.0.40
codegen_flags: <defaults>
</compile_context>

<pallas_src>
import functools

import jax
import jax.numpy as jnp
from jax.experimental import pallas as pl
from jax.experimental.pallas import tpu as pltpu


def _router_kernel(x_ref, w_ref, rw_ref, z_ref, usage_ref, *,
                   k, tm, t_valid, apply_topk, mask_pad):
    x = x_ref[...]                                   # (tm, H), caller dtype
    w = w_ref[...]                                   # (H, E),  caller dtype
    logits = jnp.dot(x, w, preferred_element_type=jnp.float32)   # (tm, E) f32

    # softmax over experts (last dim), f32 math
    m = jnp.max(logits, axis=-1, keepdims=True)
    e = jnp.exp(logits - m)
    s = jnp.sum(e, axis=-1, keepdims=True)
    # EUP approx reciprocal + one Newton-Raphson step: keeps ~f32 accuracy
    # while keeping the divide off the VALU issue slots.
    r = pl.reciprocal(s, approx=True)
    inv_s = r * (2.0 - s * r)
    probs = e * inv_s                                # (tm, E)
    lse = m + jnp.log(s)                             # (tm, 1)

    # per-tile partial reductions (reduced in the wrapper; lets the grid axis
    # be "parallel" for v7x megacore instead of a resident accumulator)
    zsq = lse * lse                                  # (tm, 1)
    if mask_pad:
        i = pl.program_id(0)
        row = i * tm + jax.lax.broadcasted_iota(jnp.int32, (tm, 1), 0)
        valid = (row < t_valid).astype(jnp.float32)
        zsq = zsq * valid
        usage = jnp.sum(probs * valid, axis=0, keepdims=True)     # (1, E)
    else:
        usage = jnp.sum(probs, axis=0, keepdims=True)             # (1, E)

    z_ref[...] = jnp.sum(zsq, axis=(0, 1), keepdims=True)[None]   # (1,1,1)
    usage_ref[...] = usage[None]                                  # (1,1,E)

    if apply_topk:
        # Token-choice: keep top-k experts per row and renormalize.
        # k row-max passes instead of k argmax/one-hot passes. (On exact
        # probability ties the mask can keep >k entries; measure-zero.)
        remaining = probs
        for _ in range(k - 1):
            mx = jnp.max(remaining, axis=-1, keepdims=True)
            remaining = jnp.where(remaining == mx, -1.0, remaining)
        kth = jnp.max(remaining, axis=-1, keepdims=True)          # k-th largest
        sel = (probs >= kth).astype(jnp.float32)
        masked = probs * sel
        d = jnp.sum(masked, axis=-1, keepdims=True)
        rd = pl.reciprocal(d, approx=True)
        inv_d = rd * (2.0 - d * rd)
        out = masked * inv_d
    else:
        # Expert-choice routing: PyTorch returns the plain softmax here.
        out = probs

    rw_ref[...] = out.astype(rw_ref.dtype)


def _vmem_capacity_bytes():
    try:
        return int(pltpu.get_tpu_info().vmem_capacity_bytes)
    except Exception:
        return 64 << 20          # conservative (v7x per-TC VMEM)


def _auto_tile_and_vmem(T, H, E, x_itemsize, w_itemsize, rw_itemsize):
    """Pick the token-tile size from VMEM capacity (per-generation) and the
    vmem_limit_bytes to request."""
    cap = _vmem_capacity_bytes()
    budget = int(cap * 0.5)                      # headroom: compiler scratch etc.
    budget -= 2 * H * E * w_itemsize             # resident (double-buffered) W
    per_tok = 2 * H * x_itemsize + 2 * E * rw_itemsize   # double-buffered x + rw
    tm = budget // max(per_tok, 1)
    tm = int(max(8, min(tm, 1024, max(T, 8))))
    tm = max(8, (tm // 8) * 8)                   # sublane-aligned

    # Padding x to a multiple of tm costs an extra full HBM read+write of x
    # (the dominant traffic). If tm does not divide T, first try to shrink tm
    # to a nearby divisor of T that is still a multiple of 8.
    if T % tm != 0 and T >= 8:
        lo = max(8, (tm // 2 // 8) * 8)
        for cand in range(tm, lo - 1, -8):
            if T % cand == 0:
                tm = cand
                break

    needed = (2 * tm * H * x_itemsize + 2 * tm * E * rw_itemsize
              + 2 * H * E * w_itemsize + (1 << 20))
    vmem_limit = int(min(int(cap * 0.9), max(needed, 32 << 20)))
    return tm, vmem_limit


def expert_router_forward(hidden_states, router_weight, *,
                          num_experts_per_token,
                          router_z_loss_coef,
                          use_load_balancing,
                          use_expert_choice_routing,
                          tm=None):
    """hidden_states: [B, S, H]; router_weight: [E, H] (PyTorch layout).

    Dtypes are preserved (pass bf16 to halve the dominant HBM read traffic);
    matmul/softmax/loss math is done in f32 in-register.
    """
    B, S, H = hidden_states.shape
    E, H_w = router_weight.shape
    assert H_w == H
    assert 1 <= num_experts_per_token <= E
    T = B * S

    x2 = hidden_states.reshape(T, H)      # no f32 upcast
    w_he = router_weight.T                # [H, E], no f32 upcast
    rw_dtype = hidden_states.dtype

    x_it = jnp.dtype(x2.dtype).itemsize
    w_it = jnp.dtype(w_he.dtype).itemsize
    rw_it = jnp.dtype(rw_dtype).itemsize
    auto_tm, vmem_limit = _auto_tile_and_vmem(T, H, E, x_it, w_it, rw_it)
    if tm is None:
        tm = auto_tm

    n_tiles = -(-T // tm)
    T_pad = n_tiles * tm
    if T_pad != T:
        x2 = jnp.pad(x2, ((0, T_pad - T), (0, 0)))

    kern = functools.partial(
        _router_kernel, k=num_experts_per_token, tm=tm, t_valid=T,
        apply_topk=not use_expert_choice_routing, mask_pad=(T_pad != T))

    # Advisory cost estimate so XLA schedules surrounding ops sensibly.
    cost = pl.CostEstimate(
        flops=2 * T_pad * H * E + 8 * T_pad * E,
        transcendentals=T_pad * (E + 3),
        bytes_accessed=(T_pad * H * x_it + H * E * w_it
                        + T_pad * E * rw_it
                        + n_tiles * (1 + E) * 4),
    )

    rw, z_part, usage_part = pl.pallas_call(
        kern,
        out_shape=(
            jax.ShapeDtypeStruct((T_pad, E), rw_dtype),
            jax.ShapeDtypeStruct((n_tiles, 1, 1), jnp.float32),
            jax.ShapeDtypeStruct((n_tiles, 1, E), jnp.float32),
        ),
        grid=(n_tiles,),
        in_specs=[
            pl.BlockSpec((tm, H), lambda i: (i, 0)),
            pl.BlockSpec((H, E), lambda i: (0, 0)),    # resident weight block
        ],
        out_specs=(
            pl.BlockSpec((tm, E), lambda i: (i, 0)),
            pl.BlockSpec((1, 1, 1), lambda i: (i, 0, 0)),   # per-tile partials
            pl.BlockSpec((1, 1, E), lambda i: (i, 0, 0)),   # per-tile partials
        ),
        compiler_params=pltpu.CompilerParams(
            dimension_semantics=("parallel",),         # v7x megacore sharding
            vmem_limit_bytes=vmem_limit),
        cost_estimate=cost,
    )(x2, w_he)

    routing_weights = rw[:T].reshape(B, S, E)

    aux_loss = {}
    if router_z_loss_coef > 0:
        z_loss = jnp.sum(z_part) / T                   # mean logsumexp^2
        aux_loss["router_z_loss"] = z_loss * router_z_loss_coef
    if use_load_balancing:
        expert_usage = jnp.sum(usage_part, axis=(0, 1)) / T
        target_usage = jnp.ones_like(expert_usage) / E
        lb = jnp.sum(target_usage * jnp.log(target_usage / expert_usage))
        aux_loss["load_balancing_loss"] = lb * 0.01
    return routing_weights, aux_loss


def _reference(hidden_states, router_weight, *, k, z_coef, use_lb):
    """Pure-JAX reference mirroring the PyTorch forward (eval, token-choice)."""
    hs = hidden_states.astype(jnp.float32)
    w = router_weight.astype(jnp.float32)
    logits = jnp.einsum("bsh,eh->bse", hs, w)
    probs = jax.nn.softmax(logits, axis=-1)
    aux = {}
    if z_coef > 0:
        lse = jax.nn.logsumexp(logits, axis=-1)
        aux["router_z_loss"] = jnp.mean(lse ** 2) * z_coef
    if use_lb:
        usage = jnp.mean(probs, axis=(0, 1))
        target = jnp.ones_like(usage) / probs.shape[-1]
        aux["load_balancing_loss"] = jnp.sum(target * jnp.log(target / usage)) * 0.01
    _, idx = jax.lax.top_k(probs, k)
    mask = jnp.sum(jax.nn.one_hot(idx, probs.shape[-1], dtype=probs.dtype), axis=-2)
    masked = probs * mask
    rw = masked / jnp.sum(masked, axis=-1, keepdims=True)
    return rw, aux


if __name__ == "__main__":
    # config: hidden_size=32, num_experts=8, num_experts_per_token=2,
    #         router_jitter_noise=0.0 (eval), router_z_loss_coef=1e-3,
    #         use_load_balancing=True, use_expert_choice_routing=False
    B, S, H, E, K = 2, 8, 32, 8, 2
    Z_COEF = 1e-3

    key = jax.random.PRNGKey(0)
    kx, kw = jax.random.split(key)
    hidden_states = jax.random.normal(kx, (B, S, H), dtype=jnp.float32)
    router_weight = 0.01 * jax.random.normal(kw, (E, H), dtype=jnp.float32)

    # --- f32 token-choice path (tight correctness check) ---
    rw, aux = expert_router_forward(
        hidden_states, router_weight,
        num_experts_per_token=K, router_z_loss_coef=Z_COEF,
        use_load_balancing=True, use_expert_choice_routing=False)
    rw = jax.block_until_ready(rw)
    aux = jax.tree_util.tree_map(jax.block_until_ready, aux)

    rw_ref, aux_ref = _reference(hidden_states, router_weight,
                                 k=K, z_coef=Z_COEF, use_lb=True)
    assert jnp.allclose(rw, rw_ref, atol=1e-5, rtol=1e-5)
    assert jnp.allclose(aux["router_z_loss"], aux_ref["router_z_loss"], atol=1e-6)
    assert jnp.allclose(aux["load_balancing_loss"],
                        aux_ref["load_balancing_loss"], atol=1e-6)

    # --- expert-choice path returns the plain softmax (PyTorch `else: pass`) ---
    rw_ec, _ = expert_router_forward(
        hidden_states, router_weight,
        num_experts_per_token=K, router_z_loss_coef=Z_COEF,
        use_load_balancing=False, use_expert_choice_routing=True)
    probs_ref = jax.nn.softmax(
        jnp.einsum("bsh,eh->bse", hidden_states, router_weight), axis=-1)
    assert jnp.allclose(jax.block_until_ready(rw_ec), probs_ref,
                        atol=1e-5, rtol=1e-5)

    # --- non-divisible token count exercises the pad/divisor path ---
    hs_odd = jax.random.normal(kx, (3, 5, H), dtype=jnp.float32)   # T = 15
    rw_odd, aux_odd = expert_router_forward(
        hs_odd, router_weight,
        num_experts_per_token=K, router_z_loss_coef=Z_COEF,
        use_load_balancing=True, use_expert_choice_routing=False)
    rw_odd = jax.block_until_ready(rw_odd)
    rw_oref, aux_oref = _reference(hs_odd, router_weight,
                                   k=K, z_coef=Z_COEF, use_lb=True)
    assert jnp.allclose(rw_odd, rw_oref, atol=1e-5, rtol=1e-5)
    assert jnp.allclose(aux_odd["router_z_loss"], aux_oref["router_z_loss"], atol=1e-6)
    assert jnp.allclose(aux_odd["load_balancing_loss"],
                        aux_oref["load_balancing_loss"], atol=1e-6)

    # --- bf16 activation/weight path (halves HBM reads; f32 MXU accumulate) ---
    hs_bf = hidden_states.astype(jnp.bfloat16)
    w_bf = router_weight.astype(jnp.bfloat16)
    rw_bf, aux_bf = expert_router_forward(
        hs_bf, w_bf,
        num_experts_per_token=K, router_z_loss_coef=Z_COEF,
        use_load_balancing=True, use_expert_choice_routing=False)
    rw_bf = jax.block_until_ready(rw_bf)
    rw_ref_bf, aux_ref_bf = _reference(hs_bf, w_bf, k=K, z_coef=Z_COEF, use_lb=True)
    assert jnp.allclose(rw_bf.astype(jnp.float32), rw_ref_bf, atol=2e-2, rtol=2e-2)
    assert jnp.allclose(aux_bf["router_z_loss"], aux_ref_bf["router_z_loss"], atol=1e-5)
    assert jnp.allclose(aux_bf["load_balancing_loss"],
                        aux_ref_bf["load_balancing_loss"], atol=1e-5)

    print("KERNEL_OK")
</pallas_src>

<mosaic_0001>
module attributes {stable_mosaic.version = 11 : i64} {
  func.func @_router_kernel(%arg0: i32, %arg1: memref<16x32xf32, #tpu.memory_space<vmem>>, %arg2: memref<32x8xf32, #tpu.memory_space<vmem>>, %arg3: memref<16x8xf32, #tpu.memory_space<vmem>>, %arg4: memref<1x1x1xf32, #tpu.memory_space<vmem>>, %arg5: memref<1x1x8xf32, #tpu.memory_space<vmem>>) attributes {dimension_semantics = [#tpu.dimension_semantics<parallel>], iteration_bounds = array<i64: 1>, scalar_prefetch = 0 : i64, scratch_operands = 0 : i64, tpu.core_type = #tpu.core_type<tc>, window_params = [{transform_indices = @transform_0, window_bounds = array<i64: 16, 32>}, {pipeline_mode = #tpu.pipeline_mode<synchronous>, transform_indices = @transform_1, window_bounds = array<i64: 32, 8>}, {transform_indices = @transform_2, window_bounds = array<i64: 16, 8>}, {transform_indices = @transform_3, window_bounds = array<i64: 1, 1, 1>}, {transform_indices = @transform_4, window_bounds = array<i64: 1, 1, 8>}]} {
    %c0 = arith.constant 0 : index
    %c0_0 = arith.constant 0 : index
    %0 = vector.load %arg1[%c0, %c0_0] : memref<16x32xf32, #tpu.memory_space<vmem>>, vector<16x32xf32>
    %c0_1 = arith.constant 0 : index
    %c0_2 = arith.constant 0 : index
    %1 = vector.load %arg2[%c0_1, %c0_2] : memref<32x8xf32, #tpu.memory_space<vmem>>, vector<32x8xf32>
    %cst = arith.constant dense<0.000000e+00> : vector<16x8xf32>
    %2 = tpu.matmul %0, %1, %cst {dimension_numbers = #tpu.dot_dimension_numbers<[1], [0], [0], [1], [0, 0, 1, 1], [], []>} : vector<16x32xf32>, vector<32x8xf32>, vector<16x8xf32> -> vector<16x8xf32>
    %cst_3 = arith.constant dense<0xFF800000> : vector<16xf32>
    %3 = vector.multi_reduction <maximumf>, %2, %cst_3 [1] : vector<16x8xf32> to vector<16xf32>
    %4 = vector.shape_cast %3 : vector<16xf32> to vector<16x1xf32>
    %5 = vector.broadcast %4 : vector<16x1xf32> to vector<16x8xf32>
    %6 = arith.subf %2, %5 : vector<16x8xf32>
    %7 = math.exp %6 : vector<16x8xf32>
    %cst_4 = arith.constant dense<0.000000e+00> : vector<16xf32>
    %8 = vector.multi_reduction <add>, %7, %cst_4 [1] : vector<16x8xf32> to vector<16xf32>
    %9 = vector.shape_cast %8 : vector<16xf32> to vector<16x1xf32>
    %10 = tpu.reciprocal %9 {approx = true} : vector<16x1xf32> -> vector<16x1xf32>
    %11 = arith.mulf %9, %10 : vector<16x1xf32>
    %cst_5 = arith.constant 2.000000e+00 : f32
    %12 = vector.broadcast %cst_5 : f32 to vector<16x1xf32>
    %13 = arith.subf %12, %11 : vector<16x1xf32>
    %14 = arith.mulf %10, %13 : vector<16x1xf32>
    %15 = vector.broadcast %14 : vector<16x1xf32> to vector<16x8xf32>
    %16 = arith.mulf %7, %15 : vector<16x8xf32>
    %17 = math.log %9 : vector<16x1xf32>
    %18 = arith.addf %4, %17 : vector<16x1xf32>
    %19 = arith.mulf %18, %18 : vector<16x1xf32>
    %cst_6 = arith.constant dense<0.000000e+00> : vector<8xf32>
    %20 = vector.multi_reduction <add>, %16, %cst_6 [0] : vector<16x8xf32> to vector<8xf32>
    %21 = vector.shape_cast %20 : vector<8xf32> to vector<1x8xf32>
    %22 = vector.shape_cast %19 : vector<16x1xf32> to vector<1x16x1xf32>
    %cst_7 = arith.constant dense<0.000000e+00> : vector<1xf32>
    %23 = vector.multi_reduction <add>, %22, %cst_7 [1, 2] : vector<1x16x1xf32> to vector<1xf32>
    %24 = vector.shape_cast %23 : vector<1xf32> to vector<1x1x1xf32>
    %25 = vector.extract %24[0, 0, 0] : f32 from vector<1x1x1xf32>
    %26 = vector.broadcast %25 : f32 to vector<1x1xf32>
    %27 = vector.shape_cast %26 : vector<1x1xf32> to vector<1x1x1xf32>
    %c0_8 = arith.constant 0 : index
    %c0_9 = arith.constant 0 : index
    %c0_10 = arith.constant 0 : index
    %28 = vector.load %arg4[%c0_8, %c0_9, %c0_10] : memref<1x1x1xf32, #tpu.memory_space<vmem>>, vector<1x1x1xf32>
    tpu.vector_store %arg4[%c0_8, %c0_9, %c0_10], %27 {strides = array<i32>} : memref<1x1x1xf32, #tpu.memory_space<vmem>>, vector<1x1x1xf32>,
    %29 = vector.shape_cast %21 : vector<1x8xf32> to vector<1x1x8xf32>
    %c0_11 = arith.constant 0 : index
    %c0_12 = arith.constant 0 : index
    %c0_13 = arith.constant 0 : index
    %30 = vector.load %arg5[%c0_11, %c0_12, %c0_13] : memref<1x1x8xf32, #tpu.memory_space<vmem>>, vector<1x1x8xf32>
    tpu.vector_store %arg5[%c0_11, %c0_12, %c0_13], %29 {strides = array<i32>} : memref<1x1x8xf32, #tpu.memory_space<vmem>>, vector<1x1x8xf32>,
    %cst_14 = arith.constant dense<0xFF800000> : vector<16xf32>
    %31 = vector.multi_reduction <maximumf>, %16, %cst_14 [1] : vector<16x8xf32> to vector<16xf32>
    %32 = vector.shape_cast %31 : vector<16xf32> to vector<16x1xf32>
    %33 = vector.broadcast %32 : vector<16x1xf32> to vector<16x8xf32>
    %34 = arith.cmpf oeq, %16, %33 : vector<16x8xf32>
    %cst_15 = arith.constant -1.000000e+00 : f32
    %35 = vector.broadcast %cst_15 : f32 to vector<16x8xf32>
    %36 = arith.select %34, %35, %16 : vector<16x8xi1>, vector<16x8xf32>
    %cst_16 = arith.constant dense<0xFF800000> : vector<16xf32>
    %37 = vector.multi_reduction <maximumf>, %36, %cst_16 [1] : vector<16x8xf32> to vector<16xf32>
    %38 = vector.shape_cast %37 : vector<16xf32> to vector<16x1xf32>
    %39 = vector.broadcast %38 : vector<16x1xf32> to vector<16x8xf32>
    %40 = arith.cmpf oge, %16, %39 : vector<16x8xf32>
    %41 = arith.extui %40 : vector<16x8xi1> to vector<16x8xi32>
    %42 = arith.sitofp %41 : vector<16x8xi32> to vector<16x8xf32>
    %43 = arith.mulf %16, %42 : vector<16x8xf32>
    %cst_17 = arith.constant dense<0.000000e+00> : vector<16xf32>
    %44 = vector.multi_reduction <add>, %43, %cst_17 [1] : vector<16x8xf32> to vector<16xf32>
    %45 = vector.shape_cast %44 : vector<16xf32> to vector<16x1xf32>
    %46 = tpu.reciprocal %45 {approx = true} : vector<16x1xf32> -> vector<16x1xf32>
    %47 = arith.mulf %45, %46 : vector<16x1xf32>
    %cst_18 = arith.constant 2.000000e+00 : f32
    %48 = vector.broadcast %cst_18 : f32 to vector<16x1xf32>
    %49 = arith.subf %48, %47 : vector<16x1xf32>
    %50 = arith.mulf %46, %49 : vector<16x1xf32>
    %51 = vector.broadcast %50 : vector<16x1xf32> to vector<16x8xf32>
    %52 = arith.mulf %43, %51 : vector<16x8xf32>
    %c0_19 = arith.constant 0 : index
    %c0_20 = arith.constant 0 : index
    %53 = vector.load %arg3[%c0_19, %c0_20] : memref<16x8xf32, #tpu.memory_space<vmem>>, vector<16x8xf32>
    tpu.vector_store %arg3[%c0_19, %c0_20], %52 {strides = array<i32>} : memref<16x8xf32, #tpu.memory_space<vmem>>, vector<16x8xf32>,
    return
  }
  func.func @transform_0(%arg0: i32) -> (i32, i32) {
    %c0_i32 = arith.constant 0 : i32
    %c0_i32_0 = arith.constant 0 : i32
    return %arg0, %c0_i32 : i32, i32
  }
  func.func @transform_1(%arg0: i32) -> (i32, i32) {
    %c0_i32 = arith.constant 0 : i32
    %c0_i32_0 = arith.constant 0 : i32
    %c0_i32_1 = arith.constant 0 : i32
    return %c0_i32, %c0_i32_0 : i32, i32
  }
  func.func @transform_2(%arg0: i32) -> (i32, i32) {
    %c0_i32 = arith.constant 0 : i32
    %c0_i32_0 = arith.constant 0 : i32
    return %arg0, %c0_i32 : i32, i32
  }
  func.func @transform_3(%arg0: i32) -> (i32, i32, i32) {
    %c0_i32 = arith.constant 0 : i32
    %c0_i32_0 = arith.constant 0 : i32
    %c0_i32_1 = arith.constant 0 : i32
    return %arg0, %c0_i32, %c0_i32_0 : i32, i32, i32
  }
  func.func @transform_4(%arg0: i32) -> (i32, i32, i32) {
    %c0_i32 = arith.constant 0 : i32
    %c0_i32_0 = arith.constant 0 : i32
    %c0_i32_1 = arith.constant 0 : i32
    return %arg0, %c0_i32, %c0_i32_0 : i32, i32, i32
  }
}

</mosaic_0001>

<llo_original>
// kernel: tpu_custom_call.1
$region0: #{tpu_custom_call.1}
  #allocation0 [shape = 'u32[]', space=smem, size = 0x4, offset = 0x4, fixed_abs, tag = 'smem constant byte address 0x4 - core index']
  #allocation1 [shape = 'u32[72,128]{1,0:T(1,128)}', space=vmem, size = 0x9000, scoped, tag = 'internal scratch']
  %s0 = inlined_call_operand.vmem [shape: f32[16,32], index: 0, kind: input, shape index: {}]
  %s1 = inlined_call_operand.vmem [shape: f32[32,8], index: 1, kind: input, shape index: {}]
  %s2 = inlined_call_operand.vmem [shape: f32[16,8], index: 2, kind: output, shape index: {0}]
  %s3 = inlined_call_operand.hbm [shape: f32[1,1,1], index: 3, kind: output, shape index: {1}]
  %s4 = inlined_call_operand.hbm [shape: f32[1,1,8], index: 4, kind: output, shape index: {2}]
  %5 = xla_tuple %s2, %s3, %s4
  %s6 = sld [smem:[#allocation0]]
  $region34: #{tpu_custom_call.1} parent=0
    _
  %s8 = ssub.s32 1, %s6
  %s9 = scalar_select 0, %s8, %s6
  $region1: #{tpu_custom_call.1} parent=0
    #allocation2 [shape = 'u8[512]{0}', space=vmem, size = 0x400, scoped, tag = 'output window, operand 1, single buffered']
    #allocation3 [shape = 's32[1]{0}', space=sflag, size = 0x4, scoped, tag = 'scoped memory for tpu_custom_call.1']
    #allocation4 [shape = 'u8[512]{0}', space=vmem, size = 0x400, scoped, tag = 'output window, operand 2, single buffered']
    #allocation5 [shape = 's32[1]{0}', space=sflag, size = 0x4, scoped, tag = 'scoped memory for tpu_custom_call.1']
    %10 = vsyncpa [#allocation3], 0
    %11 = vsyncpa [#allocation5], 0
    // Predicated region
    $region2: #{tpu_custom_call.1} parent=1 // pred_check
      _
    $region3: #{tpu_custom_call.1} parent=1 // pred_check_branch
      %13 = sbr.rel (0) target = $region5
    $region4: #{tpu_custom_call.1} parent=1 // pred_region
      _
    $region5: #{tpu_custom_call.1} parent=1 // pred_fallthru
      _
    // Predicated region
    $region6: #{tpu_custom_call.1} parent=1 // pred_check
      _
    $region7: #{tpu_custom_call.1} parent=1 // pred_check_branch
      %15 = sbr.rel (0) target = $region9
    $region8: #{tpu_custom_call.1} parent=1 // pred_region
      _
    $region9: #{tpu_custom_call.1} parent=1 // pred_fallthru
      _
    %v16 = vld [vmem:[%s0] sm:$0xff]
    %v17 = vld [vmem:[%s0 + $0x8] sm:$0xff]
    %v18 = vld [vmem:[%s1] sm:$0xff]
    %v19 = vld [vmem:[%s1 + $0x8] sm:$0xff]
    %v20 = vld [vmem:[%s1 + $0x10] sm:$0xff]
    %v21 = vld [vmem:[%s1 + $0x18] sm:$0xff]
    %vm22 = vcmask 261120
    %v24 = vsel %vm22, %v16, 0
    %v27 = vsel %vm22, %v17, 0
    %29 = vmatpush.msra.mxu0 0.0
    %30 = vmatpush.msra.mxu0 0.0
    %31 = vmatpush.msra.mxu0 0.0
    %32 = vmatpush.msra.mxu0 0.0
    %33 = vmatpush.msra.mxu0 0.0
    %34 = vmatpush.msra.mxu0 0.0
    %35 = vmatpush.msra.mxu0 0.0
    %36 = vmatpush.msra.mxu0 0.0
    %37 = vmatpush.msra.mxu0 0.0
    %38 = vmatpush.msra.mxu0 0.0
    %39 = vmatpush.msra.mxu0 0.0
    %40 = vmatpush.msra.mxu0 0.0
    %41 = vmatpush.msra.mxu0 %v21
    %42 = vmatpush.msra.mxu0 %v20
    %43 = vmatpush.msra.mxu0 %v19
    %44 = vmatpush.msra.mxu0 %v18
    %45 = vmatmul.f32.gmra.mxu0 %v24
    %v46 = vpop.f32.mrf.mxu0
    %v47 = vadd.f32 0.0, %v46
    %48 = vmatmul.f32.gmra.mxu0 %v27
    %v49 = vpop.f32.mrf.mxu0
    %v50 = vadd.f32 0.0, %v49
    %51 = vdwg.mxu0
    %vm52 = vcmask 64512
    %v53 = vsel %vm52, %v47, -inf
    %54 = vmax.xlane.f32.xlu0 %v53
    %v55 = vpop.xlane.xlu0 %54
    %v56 = vsel %vm52, %v50, -inf
    %57 = vmax.xlane.f32.xlu0 %v56
    %v58 = vpop.xlane.xlu0 %57
    %v59 = vsub.f32 %v47, %v55
    %v60 = vsub.f32 %v50, %v58
    %v61 = vmul.f32 %v59, 1.442695
    %v62 = vpow.pop %v61
    %v63 = vmul.f32 %v60, 1.442695
    %v64 = vpow.pop %v63
    %v65 = vsel %vm52, %v62, 0.0
    %66 = vadd.xlane.f32.xlu0 %v65
    %v67 = vpop.xlane.xlu0 %66
    %v68 = vsel %vm52, %v64, 0.0
    %69 = vadd.xlane.f32.xlu0 %v68
    %v70 = vpop.xlane.xlu0 %69
    %v71 = vrcp.pop %v67
    %v72 = vrcp.pop %v70
    %v73 = vmul.f32 %v67, %v71
    %v74 = vmul.f32 %v70, %v72
    %v75 = vsub.f32 2.0, %v73
    %v76 = vsub.f32 2.0, %v74
    %v77 = vmul.f32 %v71, %v75
    %v78 = vmul.f32 %v72, %v76
    %v79 = vmul.f32 %v62, %v77
    %v80 = vmul.f32 %v64, %v78
    %v81 = vlog2.pop %v67
    %v82 = vmul.f32 %v81, 0.6931472
    %v83 = vlog2.pop %v70
    %v84 = vmul.f32 %v83, 0.6931472
    %v85 = vadd.f32 %v55, %v82
    %v86 = vadd.f32 %v58, %v84
    %v87 = vmul.f32 %v85, %v85
    %v88 = vmul.f32 %v86, %v86
    %v89 = vsel %vm52, %v79, 0.0
    %v90 = vsel %vm52, %v80, 0.0
    %v91 = vadd.f32 %v89, %v90
    %v92 = vrot.slane %v91, 4
    %v93 = vadd.f32 %v91, %v92
    %v94 = vrot.slane %v93, 2
    %v95 = vadd.f32 %v93, %v94
    %v96 = vrot.slane %v95, 1
    %v97 = vadd.f32 %v95, %v96
    %vm98 = vcmask 7168
    %v99 = vsel %vm98, %v87, 0.0
    %v100 = vsel %vm98, %v88, 0.0
    %v101 = vadd.f32 %v99, %v100
    %102 = vadd.xlane.f32.xlu0 %v101
    %v103 = vpop.xlane.xlu0 %102
    %v104 = vrot.slane %v103, 4
    %v105 = vadd.f32 %v103, %v104
    %v106 = vrot.slane %v105, 2
    %v107 = vadd.f32 %v105, %v106
    %v108 = vrot.slane %v107, 1
    %v109 = vadd.f32 %v107, %v108
    %s110 = vtos %v109
    %v111 = vstv %s110
    %vm112 = vcmask 0
    %113 = vst.msk [vmem:[#allocation2] sm:$0x1] %vm112, %v111
    %vm114 = vcmask 57344
    %115 = vst.msk [vmem:[#allocation4] sm:$0x1] %vm114, %v97
    %v116 = vsel %vm52, %v79, -inf
    %117 = vmax.xlane.f32.xlu0 %v116
    %v118 = vpop.xlane.xlu0 %117
    %v119 = vsel %vm52, %v80, -inf
    %120 = vmax.xlane.f32.xlu0 %v119
    %v121 = vpop.xlane.xlu0 %120
    %vm122 = vcmp.eq.f32.partialorder %v79, %v118
    %vm123 = vcmp.eq.f32.partialorder %v80, %v121
    %v124 = vsel %vm122, -1.0, %v79
    %v125 = vsel %vm123, -1.0, %v80
    %v126 = vsel %vm52, %v124, -inf
    %127 = vmax.xlane.f32.xlu0 %v126
    %v128 = vpop.xlane.xlu0 %127
    %v129 = vsel %vm52, %v125, -inf
    %130 = vmax.xlane.f32.xlu0 %v129
    %v131 = vpop.xlane.xlu0 %130
    %vm132 = vcmp.ge.f32.partialorder %v79, %v128
    %vm133 = vcmp.ge.f32.partialorder %v80, %v131
    %v134 = vsel %vm132, 1, 0
    %v135 = vsel %vm133, 1, 0
    %v136 = vcvt.s32.f32 %v134
    %v137 = vcvt.s32.f32 %v135
    %v138 = vmul.f32 %v79, %v136
    %v139 = vmul.f32 %v80, %v137
    %v140 = vsel %vm52, %v138, 0.0
    %141 = vadd.xlane.f32.xlu0 %v140
    %v142 = vpop.xlane.xlu0 %141
    %v143 = vsel %vm52, %v139, 0.0
    %144 = vadd.xlane.f32.xlu0 %v143
    %v145 = vpop.xlane.xlu0 %144
    %v146 = vrcp.pop %v142
    %v147 = vrcp.pop %v145
    %v148 = vmul.f32 %v142, %v146
    %v149 = vmul.f32 %v145, %v147
    %v150 = vsub.f32 2.0, %v148
    %v151 = vsub.f32 2.0, %v149
    %v152 = vmul.f32 %v146, %v150
    %v153 = vmul.f32 %v147, %v151
    %v154 = vmul.f32 %v138, %v152
    %v155 = vmul.f32 %v139, %v153
    %156 = vst.msk [vmem:[%s2] sm:$0xff] %vm52, %v154
    %157 = vst.msk [vmem:[%s2 + $0x8] sm:$0xff] %vm52, %v155
    // Predicated region
    $region10: #{tpu_custom_call.1} parent=1 // pred_check
      _
    $region11: #{tpu_custom_call.1} parent=1 // pred_check_branch
      %159 = sbr.rel (0) target = $region13
    $region12: #{tpu_custom_call.1} parent=1 // pred_region
      _
    $region13: #{tpu_custom_call.1} parent=1 // pred_fallthru
      _
    // Predicated region
    $region14: #{tpu_custom_call.1} parent=1 // pred_check
      _
    $region15: #{tpu_custom_call.1} parent=1 // pred_check_branch
      %161 = sbr.rel (0) target = $region17
    $region16: #{tpu_custom_call.1} parent=1 // pred_region
      %163 = vsyncadd [#allocation3], 0
      %s165 = sshll.u32 [#allocation2], 4
      %s166 = int_to_ptr.vmem [resolvable:$true] %s165
      %s167 = sshll.u32 %s3, 4
      %s168 = int_to_ptr.hbm [resolvable:$true] %s167
      %170 = dma.vmem_to_hbm [thread:$0]  %s166, 16, %s168, [#allocation3]
    $region17: #{tpu_custom_call.1} parent=1 // pred_fallthru
      _
    // Predicated region
    $region18: #{tpu_custom_call.1} parent=1 // pred_check
      _
    $region19: #{tpu_custom_call.1} parent=1 // pred_check_branch
      %172 = sbr.rel (0) target = $region21
    $region20: #{tpu_custom_call.1} parent=1 // pred_region
      %174 = vsyncadd [#allocation5], 0
      %s176 = sshll.u32 [#allocation4], 4
      %s177 = int_to_ptr.vmem [resolvable:$true] %s176
      %s178 = sshll.u32 %s4, 4
      %s179 = int_to_ptr.hbm [resolvable:$true] %s178
      %181 = dma.vmem_to_hbm [thread:$0]  %s177, 16, %s179, [#allocation5]
    $region21: #{tpu_custom_call.1} parent=1 // pred_fallthru
      _
    // Predicated region
    $region22: #{tpu_custom_call.1} parent=1 // pred_check
      _
    $region23: #{tpu_custom_call.1} parent=1 // pred_check_branch
      %183 = sbr.rel (0) target = $region25
    $region24: #{tpu_custom_call.1} parent=1 // pred_region
      _
    $region25: #{tpu_custom_call.1} parent=1 // pred_fallthru
      _
    // Predicated region
    $region26: #{tpu_custom_call.1} parent=1 // pred_check
      _
    $region27: #{tpu_custom_call.1} parent=1 // pred_check_branch
      %185 = sbr.rel (0) target = $region29
    $region28: #{tpu_custom_call.1} parent=1 // pred_region
      %187 = dma.done [#allocation3], 16
    $region29: #{tpu_custom_call.1} parent=1 // pred_fallthru
      _
    // Predicated region
    $region30: #{tpu_custom_call.1} parent=1 // pred_check
      _
    $region31: #{tpu_custom_call.1} parent=1 // pred_check_branch
      %189 = sbr.rel (0) target = $region33
    $region32: #{tpu_custom_call.1} parent=1 // pred_region
      %191 = dma.done [#allocation5], 16
    $region33: #{tpu_custom_call.1} parent=1 // pred_fallthru
      _
    %192 = vsyncpa [#allocation3], 1
    %193 = vsyncpa [#allocation5], 1

</llo_original>
